<compile_context>
chip_gen: v5e
topology: v5e:2x2
jax: 0.10.0
libtpu: 0.0.40
codegen_flags: <defaults>
</compile_context>

<pallas_src>
import functools

import jax
import jax.numpy as jnp
from jax import lax
from jax.experimental import pallas as pl
from jax.experimental.pallas import tpu as pltpu

_PDIM = 8  # coordinate width after padding (3 -> 8, sublane friendly)


def _round_up(a, b):
    return ((a + b - 1) // b) * b


# ----------------------------------------------------------------------------
# Fused kernel: kNN(k=3) interpolation + Linear(+folded BN)+ReLU on x + add
# ----------------------------------------------------------------------------
def _transition_up_kernel(x_ref, pos_ref, pos_sub_t_ref, q2_ref, xsub_ref,
                          w_ref, shift_ref, o_ref, *, k, idx_mask):
    pos = pos_ref[...]                     # (TN, 8) f32 (zero-padded coords)

    # --- squared pairwise distances (TN, Nsub): |p|^2 + |q|^2 - 2 p.q.
    # pos_sub arrives pre-transposed (8, Nsub): lane-dense RHS, plain MXU dot.
    # TODO(synk): this formulation loses precision for near-coincident points (the torch
    #             reference uses exact differences); acceptable for kNN selection here.
    p2 = jnp.sum(pos * pos, axis=-1, keepdims=True)                     # (TN, 1)
    cross = jnp.dot(pos, pos_sub_t_ref[...],
                    preferred_element_type=jnp.float32)                 # (TN, Nsub)
    d2 = jnp.maximum(p2 + q2_ref[...] - 2.0 * cross, 0.0)

    # --- top-k: pack (distance, column) into one sortable int32 key so each of the k
    #     steps needs only a single cross-lane min (column index breaks exact ties,
    #     matching argsort's stable order).  The selected distance is recovered straight
    #     from the packed min key, so the inverse-squared-distance weights and their sum
    #     are built as (TN, 1) columns inside the loop — no full-width reciprocal,
    #     mask-multiply or row-sum epilogue.
    col = lax.broadcasted_iota(jnp.int32, d2.shape, 1)
    work = (pltpu.bitcast(d2, jnp.int32) & jnp.int32(~idx_mask)) | col

    wmask = jnp.zeros_like(d2)             # (TN, Nsub) selected 1/d2 weights
    denom = jnp.zeros_like(p2)             # (TN, 1)    sum of selected weights
    for _ in range(k):
        kmin = jnp.min(work, axis=-1, keepdims=True)        # one XLU reduction / step
        sel_col = kmin & jnp.int32(idx_mask)
        sel_d2 = pltpu.bitcast(kmin & jnp.int32(~idx_mask), jnp.float32)   # (TN, 1)
        rd = pl.reciprocal(jnp.maximum(sel_d2, 1e-16), approx=True)        # EUP recip
        onehot = col == sel_col
        wmask = wmask + jnp.where(onehot, rd, 0.0)
        denom = denom + rd
        work = jnp.where(onehot, jnp.int32(0x7FFFFFFF), work)

    # interpolation as a bf16 x bf16 MXU matmul (f32 accumulation); weights up to 1e16
    # are representable in bf16 (same exponent range as f32, ~0.4% rel error).
    # Normalization is applied after the matmul on the (TN, cp) result.
    interp = jnp.dot(wmask.astype(jnp.bfloat16), xsub_ref[...],
                     preferred_element_type=jnp.float32)
    interp = interp * pl.reciprocal(denom, approx=True)

    # x branch: bf16 x bf16 MXU matmul, BN scale already folded into W -> add shift only.
    h = jnp.dot(x_ref[...], w_ref[...], preferred_element_type=jnp.float32)
    h = jnp.maximum(h + shift_ref[...], 0.0)

    o_ref[...] = h + interp


def transition_up_fused(x, pos_p, pos_sub_t, q2, xsub, w, shift, *, k, tile_n,
                        vmem_limit_bytes):
    n, cp = x.shape
    pdim, n_sub = pos_sub_t.shape
    # TODO(synk): packed-key selection keeps only the top (23 - idx_bits) mantissa bits of
    #             d2; fine for n_sub up to a few thousand, degrades for n_sub >~ 2^16.
    idx_bits = max(1, (n_sub - 1).bit_length())
    kern = functools.partial(_transition_up_kernel, k=k, idx_mask=(1 << idx_bits) - 1)
    return pl.pallas_call(
        kern,
        # TODO(synk): on v5e a bf16 output would halve the largest per-tile DMA if the
        #             downstream consumer tolerates it; kept f32 to match the reference.
        out_shape=jax.ShapeDtypeStruct((n, cp), jnp.float32),
        grid_spec=pltpu.PrefetchScalarGridSpec(
            num_scalar_prefetch=0,
            grid=(n // tile_n,),
            in_specs=[
                pl.BlockSpec((tile_n, cp), lambda i: (i, 0)),    # x tile (bf16)
                pl.BlockSpec((tile_n, pdim), lambda i: (i, 0)),  # pos tile (f32)
                # TODO(synk): the grid-invariant operands below could be single-buffered
                #             (pipeline_mode=pl.Buffered(1)) to halve their footprint on
                #             v7x's 64 MiB per-TC VMEM when n_sub is large.
                pl.BlockSpec((pdim, n_sub), lambda i: (0, 0)),   # pos_sub^T (f32, lane-dense)
                pl.BlockSpec((1, n_sub), lambda i: (0, 0)),      # |pos_sub|^2 row (f32)
                pl.BlockSpec((n_sub, cp), lambda i: (0, 0)),     # mlp_sub(x_sub) (bf16)
                pl.BlockSpec((cp, cp), lambda i: (0, 0)),        # W2 * bn_scale (bf16)
                pl.BlockSpec((1, cp), lambda i: (0, 0)),         # bn shift (f32)
            ],
            out_specs=pl.BlockSpec((tile_n, cp), lambda i: (i, 0)),
        ),
        compiler_params=pltpu.CompilerParams(
            dimension_semantics=("parallel",),
            vmem_limit_bytes=vmem_limit_bytes,
        ),
    )(x, pos_p, pos_sub_t, q2, xsub, w, shift)


# ----------------------------------------------------------------------------
# VMEM-aware tile selection (static shapes -> plain Python math)
# ----------------------------------------------------------------------------
def _vmem_bytes(tile_n, n_sub, cp):
    """Rough per-TC VMEM footprint: double-buffered pipeline blocks + kernel temporaries."""
    tiled = tile_n * (cp * 2 + _PDIM * 4 + cp * 4)            # x(bf16) + pos(f32) + out(f32)
    invariant = (n_sub * cp * 2 + cp * cp * 2                 # xsub, W2 (bf16)
                 + _PDIM * n_sub * 4 + n_sub * 4 + cp * 4)    # pos_sub^T, q2, shift (f32)
    temps = 6 * tile_n * n_sub * 4 + 3 * tile_n * cp * 4      # d2/keys/wmask/... + h/interp
    return 2 * (tiled + invariant) + temps


_VMEM_BUDGET = 40 * 1024 * 1024   # leaves headroom inside v7x's 64 MiB per-TC VMEM


def _choose_tile_n(n, n_sub, cp, requested):
    tile_n = _round_up(max(8, requested), 8)
    while tile_n > 8 and _vmem_bytes(tile_n, n_sub, cp) > _VMEM_BUDGET:
        tile_n = max(8, _round_up(tile_n // 2, 8))
    tile_n = max(8, min(tile_n, _round_up(n, 8)))
    # v7x megacore: make sure the grid has >= 2 steps so both TensorCores get work.
    if n > 8 and _round_up(n, tile_n) // tile_n < 2:
        tile_n = _round_up(-(-n // 2), 8)
    return tile_n


# ----------------------------------------------------------------------------
# Module wrapper (parameter folding + layout plumbing in plain JAX)
# ----------------------------------------------------------------------------
def _fold_bn(bias, gamma, beta, mean, var, eps=1e-5):
    scale = gamma / jnp.sqrt(var + eps)
    shift = beta + (bias - mean) * scale
    return scale[None, :], shift[None, :]


def init_params(key, in_channels, out_channels):
    ks = jax.random.split(key, 10)
    p = {}
    # mlp_sub: Linear(in->out) + BN(out) + ReLU
    p['w1'] = jax.random.normal(ks[0], (in_channels, out_channels), jnp.float32) / jnp.sqrt(in_channels)
    b1 = jax.random.normal(ks[1], (out_channels,), jnp.float32) * 0.1
    g1 = 1.0 + 0.1 * jax.random.normal(ks[2], (out_channels,), jnp.float32)
    be1 = 0.1 * jax.random.normal(ks[3], (out_channels,), jnp.float32)
    m1 = 0.1 * jax.random.normal(ks[4], (out_channels,), jnp.float32)
    v1 = 0.5 + jax.random.uniform(ks[5], (out_channels,), jnp.float32)
    p['s1'], p['sh1'] = _fold_bn(b1, g1, be1, m1, v1)
    # mlp: Linear(out->out) + BN(out) + ReLU
    p['w2'] = jax.random.normal(ks[6], (out_channels, out_channels), jnp.float32) / jnp.sqrt(out_channels)
    b2 = jax.random.normal(ks[7], (out_channels,), jnp.float32) * 0.1
    g2 = 1.0 + 0.1 * jax.random.normal(ks[8], (out_channels,), jnp.float32)
    be2 = 0.1 * jax.random.normal(ks[9], (out_channels,), jnp.float32)
    p['s2'], p['sh2'] = _fold_bn(b2, g2, be2, jnp.zeros_like(b2), jnp.ones_like(b2))
    return p


@functools.partial(jax.jit, static_argnames=("k", "tile_n"))
def transition_up(params, x, x_sub, pos, pos_sub, *, k=3, tile_n=512):
    n, c_out = x.shape
    n_sub = pos_sub.shape[0]
    cp = _round_up(c_out, 128)                  # lane-dense channel dim
    tn = _choose_tile_n(n, n_sub, cp, tile_n)   # VMEM-aware (bigger tiles on 128 MiB parts)
    n_pad = _round_up(n, tn)                    # padded N so the grid has no dropped tail

    # ---- stage 1: mlp_sub(x_sub) — one small matmul, done in plain XLA (BN folded) ----
    h_sub = jax.nn.relu(x_sub @ (params['w1'] * params['s1']) + params['sh1'])

    # ---- wrapper-side layout plumbing: coords 3->8 (pos_sub pre-transposed, lane-dense),
    #      channels -> cp, rows -> n_pad ----
    pos_p = jnp.pad(pos, ((0, n_pad - n), (0, _PDIM - 3)))
    pos_sub_t = jnp.pad(pos_sub, ((0, 0), (0, _PDIM - 3))).T             # (8, n_sub)
    q2 = jnp.sum(pos_sub_t * pos_sub_t, axis=0, keepdims=True)           # (1, n_sub)

    # TODO(synk): keep x in bf16 upstream of this op (or use allow_input_fusion) to avoid
    #             the extra HBM round-trip of this pad+cast on bandwidth-poor parts (v5e).
    x_p = jnp.pad(x, ((0, n_pad - n), (0, cp - c_out))).astype(jnp.bfloat16)
    h_sub_p = jnp.pad(h_sub, ((0, 0), (0, cp - c_out))).astype(jnp.bfloat16)
    w2 = jnp.pad(params['w2'] * params['s2'],
                 ((0, cp - c_out), (0, cp - c_out))).astype(jnp.bfloat16)
    sh2 = jnp.pad(params['sh2'], ((0, 0), (0, cp - c_out)))

    # scoped VMEM limit sized from the actual buffer math (capped so v7x keeps headroom;
    # v5e's 16 MiB default is always overridden).
    vmem_limit = min(48 * 1024 * 1024,
                     max(32 * 1024 * 1024, int(1.5 * _vmem_bytes(tn, n_sub, cp))))

    out = transition_up_fused(x_p, pos_p, pos_sub_t, q2, h_sub_p, w2, sh2,
                              k=k, tile_n=tn, vmem_limit_bytes=vmem_limit)
    return out[:n, :c_out]


# ----------------------------------------------------------------------------
# Pure-JAX f32 reference (for correctness check)
# ----------------------------------------------------------------------------
def reference(params, x, x_sub, pos, pos_sub, k=3):
    h_sub = jax.nn.relu(x_sub @ params['w1'] * params['s1'] + params['sh1'])
    d2 = jnp.sum((pos[:, None, :] - pos_sub[None, :, :]) ** 2, axis=-1)
    idx = jnp.argsort(d2, axis=-1)[:, :k]
    dk = jnp.take_along_axis(d2, idx, axis=-1)
    w = 1.0 / jnp.maximum(dk, 1e-16)
    feats = h_sub[idx]                                        # (N, k, C)
    interp = jnp.sum(feats * w[..., None], axis=1) / jnp.sum(w, axis=1, keepdims=True)
    h = jax.nn.relu(x @ params['w2'] * params['s2'] + params['sh2'])
    return h + interp


if __name__ == "__main__":
    key = jax.random.PRNGKey(0)
    k_param, k_x, k_xs, k_p, k_ps = jax.random.split(key, 5)

    N, N_sub = 64, 16
    in_channels, out_channels = 32, 16

    params = init_params(k_param, in_channels, out_channels)
    x = jax.random.normal(k_x, (N, out_channels), jnp.float32)
    x_sub = jax.random.normal(k_xs, (N_sub, in_channels), jnp.float32)
    pos = jax.random.normal(k_p, (N, 3), jnp.float32)
    pos_sub = jax.random.normal(k_ps, (N_sub, 3), jnp.float32)

    out = transition_up(params, x, x_sub, pos, pos_sub)
    out = jax.block_until_ready(out)

    ref = reference(params, x, x_sub, pos, pos_sub)
    assert out.shape == (N, out_channels)
    # bf16 feature/weight matmuls + approx reciprocals vs. a pure-f32 reference -> loose tol.
    assert jnp.allclose(out, ref, atol=1e-1, rtol=1e-1), float(jnp.max(jnp.abs(out - ref)))

    print("KERNEL_OK")
</pallas_src>

<mosaic_0001>
module attributes {stable_mosaic.version = 11 : i64} {
  func.func @_transition_up_kernel(%arg0: i32, %arg1: memref<32x128xbf16, #tpu.memory_space<vmem>>, %arg2: memref<32x8xf32, #tpu.memory_space<vmem>>, %arg3: memref<8x16xf32, #tpu.memory_space<vmem>>, %arg4: memref<1x16xf32, #tpu.memory_space<vmem>>, %arg5: memref<16x128xbf16, #tpu.memory_space<vmem>>, %arg6: memref<128x128xbf16, #tpu.memory_space<vmem>>, %arg7: memref<1x128xf32, #tpu.memory_space<vmem>>, %arg8: memref<32x128xf32, #tpu.memory_space<vmem>>) attributes {dimension_semantics = [#tpu.dimension_semantics<parallel>], iteration_bounds = array<i64: 2>, scalar_prefetch = 0 : i64, scratch_operands = 0 : i64, tpu.core_type = #tpu.core_type<tc>, window_params = [{transform_indices = @transform_0, window_bounds = array<i64: 32, 128>}, {transform_indices = @transform_1, window_bounds = array<i64: 32, 8>}, {pipeline_mode = #tpu.pipeline_mode<synchronous>, transform_indices = @transform_2, window_bounds = array<i64: 8, 16>}, {pipeline_mode = #tpu.pipeline_mode<synchronous>, transform_indices = @transform_3, window_bounds = array<i64: 1, 16>}, {pipeline_mode = #tpu.pipeline_mode<synchronous>, transform_indices = @transform_4, window_bounds = array<i64: 16, 128>}, {pipeline_mode = #tpu.pipeline_mode<synchronous>, transform_indices = @transform_5, window_bounds = array<i64: 128, 128>}, {pipeline_mode = #tpu.pipeline_mode<synchronous>, transform_indices = @transform_6, window_bounds = array<i64: 1, 128>}, {transform_indices = @transform_7, window_bounds = array<i64: 32, 128>}]} {
    %c0 = arith.constant 0 : index
    %c0_0 = arith.constant 0 : index
    %0 = vector.load %arg2[%c0, %c0_0] : memref<32x8xf32, #tpu.memory_space<vmem>>, vector<32x8xf32>
    %1 = arith.mulf %0, %0 : vector<32x8xf32>
    %cst = arith.constant dense<0.000000e+00> : vector<32xf32>
    %2 = vector.multi_reduction <add>, %1, %cst [1] : vector<32x8xf32> to vector<32xf32>
    %3 = vector.shape_cast %2 : vector<32xf32> to vector<32x1xf32>
    %c0_1 = arith.constant 0 : index
    %c0_2 = arith.constant 0 : index
    %4 = vector.load %arg3[%c0_1, %c0_2] : memref<8x16xf32, #tpu.memory_space<vmem>>, vector<8x16xf32>
    %cst_3 = arith.constant dense<0.000000e+00> : vector<32x16xf32>
    %5 = tpu.matmul %0, %4, %cst_3 {dimension_numbers = #tpu.dot_dimension_numbers<[1], [0], [0], [1], [0, 0, 1, 1], [], []>} : vector<32x8xf32>, vector<8x16xf32>, vector<32x16xf32> -> vector<32x16xf32>
    %c0_4 = arith.constant 0 : index
    %c0_5 = arith.constant 0 : index
    %6 = vector.load %arg4[%c0_4, %c0_5] : memref<1x16xf32, #tpu.memory_space<vmem>>, vector<1x16xf32>
    %7 = vector.broadcast %3 : vector<32x1xf32> to vector<32x16xf32>
    %8 = vector.broadcast %6 : vector<1x16xf32> to vector<32x16xf32>
    %9 = arith.addf %7, %8 : vector<32x16xf32>
    %cst_6 = arith.constant 2.000000e+00 : f32
    %10 = vector.broadcast %cst_6 : f32 to vector<32x16xf32>
    %11 = arith.mulf %10, %5 : vector<32x16xf32>
    %12 = arith.subf %9, %11 : vector<32x16xf32>
    %cst_7 = arith.constant 0.000000e+00 : f32
    %13 = vector.broadcast %cst_7 : f32 to vector<32x16xf32>
    %14 = arith.maximumf %12, %13 : vector<32x16xf32>
    %15 = tpu.iota {dimensions = array<i32: 1>} : vector<32x16xi32>
    %16 = tpu.bitcast %14 : vector<32x16xf32> -> vector<32x16xi32>
    %c-16_i32 = arith.constant -16 : i32
    %17 = vector.broadcast %c-16_i32 : i32 to vector<32x16xi32>
    %18 = arith.andi %16, %17 : vector<32x16xi32>
    %19 = arith.ori %18, %15 : vector<32x16xi32>
    %cst_8 = arith.constant 0.000000e+00 : f32
    %20 = vector.broadcast %cst_8 : f32 to vector<32x16xf32>
    %cst_9 = arith.constant 0.000000e+00 : f32
    %21 = vector.broadcast %cst_9 : f32 to vector<32x1xf32>
    %cst_10 = arith.constant dense<2147483647> : vector<32xi32>
    %22 = vector.multi_reduction <minsi>, %19, %cst_10 [1] : vector<32x16xi32> to vector<32xi32>
    %23 = vector.shape_cast %22 : vector<32xi32> to vector<32x1xi32>
    %c15_i32 = arith.constant 15 : i32
    %24 = vector.broadcast %c15_i32 : i32 to vector<32x1xi32>
    %25 = arith.andi %23, %24 : vector<32x1xi32>
    %c-16_i32_11 = arith.constant -16 : i32
    %26 = vector.broadcast %c-16_i32_11 : i32 to vector<32x1xi32>
    %27 = arith.andi %23, %26 : vector<32x1xi32>
    %28 = tpu.bitcast %27 : vector<32x1xi32> -> vector<32x1xf32>
    %cst_12 = arith.constant 1.000000e-16 : f32
    %29 = vector.broadcast %cst_12 : f32 to vector<32x1xf32>
    %30 = arith.maximumf %28, %29 : vector<32x1xf32>
    %31 = tpu.reciprocal %30 {approx = true} : vector<32x1xf32> -> vector<32x1xf32>
    %32 = vector.broadcast %25 : vector<32x1xi32> to vector<32x16xi32>
    %33 = arith.cmpi eq, %15, %32 : vector<32x16xi32>
    %cst_13 = arith.constant 0.000000e+00 : f32
    %34 = vector.shape_cast %31 : vector<32x1xf32> to vector<32x1xf32>
    %35 = vector.broadcast %34 : vector<32x1xf32> to vector<32x16xf32>
    %36 = vector.broadcast %cst_13 : f32 to vector<32x16xf32>
    %37 = arith.select %33, %35, %36 : vector<32x16xi1>, vector<32x16xf32>
    %38 = arith.addf %20, %37 : vector<32x16xf32>
    %39 = arith.addf %21, %31 : vector<32x1xf32>
    %c2147483647_i32 = arith.constant 2147483647 : i32
    %40 = vector.broadcast %c2147483647_i32 : i32 to vector<32x16xi32>
    %41 = arith.select %33, %40, %19 : vector<32x16xi1>, vector<32x16xi32>
    %cst_14 = arith.constant dense<2147483647> : vector<32xi32>
    %42 = vector.multi_reduction <minsi>, %41, %cst_14 [1] : vector<32x16xi32> to vector<32xi32>
    %43 = vector.shape_cast %42 : vector<32xi32> to vector<32x1xi32>
    %c15_i32_15 = arith.constant 15 : i32
    %44 = vector.broadcast %c15_i32_15 : i32 to vector<32x1xi32>
    %45 = arith.andi %43, %44 : vector<32x1xi32>
    %c-16_i32_16 = arith.constant -16 : i32
    %46 = vector.broadcast %c-16_i32_16 : i32 to vector<32x1xi32>
    %47 = arith.andi %43, %46 : vector<32x1xi32>
    %48 = tpu.bitcast %47 : vector<32x1xi32> -> vector<32x1xf32>
    %cst_17 = arith.constant 1.000000e-16 : f32
    %49 = vector.broadcast %cst_17 : f32 to vector<32x1xf32>
    %50 = arith.maximumf %48, %49 : vector<32x1xf32>
    %51 = tpu.reciprocal %50 {approx = true} : vector<32x1xf32> -> vector<32x1xf32>
    %52 = vector.broadcast %45 : vector<32x1xi32> to vector<32x16xi32>
    %53 = arith.cmpi eq, %15, %52 : vector<32x16xi32>
    %cst_18 = arith.constant 0.000000e+00 : f32
    %54 = vector.shape_cast %51 : vector<32x1xf32> to vector<32x1xf32>
    %55 = vector.broadcast %54 : vector<32x1xf32> to vector<32x16xf32>
    %56 = vector.broadcast %cst_18 : f32 to vector<32x16xf32>
    %57 = arith.select %53, %55, %56 : vector<32x16xi1>, vector<32x16xf32>
    %58 = arith.addf %38, %57 : vector<32x16xf32>
    %59 = arith.addf %39, %51 : vector<32x1xf32>
    %c2147483647_i32_19 = arith.constant 2147483647 : i32
    %60 = vector.broadcast %c2147483647_i32_19 : i32 to vector<32x16xi32>
    %61 = arith.select %53, %60, %41 : vector<32x16xi1>, vector<32x16xi32>
    %cst_20 = arith.constant dense<2147483647> : vector<32xi32>
    %62 = vector.multi_reduction <minsi>, %61, %cst_20 [1] : vector<32x16xi32> to vector<32xi32>
    %63 = vector.shape_cast %62 : vector<32xi32> to vector<32x1xi32>
    %c15_i32_21 = arith.constant 15 : i32
    %64 = vector.broadcast %c15_i32_21 : i32 to vector<32x1xi32>
    %65 = arith.andi %63, %64 : vector<32x1xi32>
    %c-16_i32_22 = arith.constant -16 : i32
    %66 = vector.broadcast %c-16_i32_22 : i32 to vector<32x1xi32>
    %67 = arith.andi %63, %66 : vector<32x1xi32>
    %68 = tpu.bitcast %67 : vector<32x1xi32> -> vector<32x1xf32>
    %cst_23 = arith.constant 1.000000e-16 : f32
    %69 = vector.broadcast %cst_23 : f32 to vector<32x1xf32>
    %70 = arith.maximumf %68, %69 : vector<32x1xf32>
    %71 = tpu.reciprocal %70 {approx = true} : vector<32x1xf32> -> vector<32x1xf32>
    %72 = vector.broadcast %65 : vector<32x1xi32> to vector<32x16xi32>
    %73 = arith.cmpi eq, %15, %72 : vector<32x16xi32>
    %cst_24 = arith.constant 0.000000e+00 : f32
    %74 = vector.shape_cast %71 : vector<32x1xf32> to vector<32x1xf32>
    %75 = vector.broadcast %74 : vector<32x1xf32> to vector<32x16xf32>
    %76 = vector.broadcast %cst_24 : f32 to vector<32x16xf32>
    %77 = arith.select %73, %75, %76 : vector<32x16xi1>, vector<32x16xf32>
    %78 = arith.addf %58, %77 : vector<32x16xf32>
    %79 = arith.addf %59, %71 : vector<32x1xf32>
    %80 = arith.truncf %78 : vector<32x16xf32> to vector<32x16xbf16>
    %c0_25 = arith.constant 0 : index
    %c0_26 = arith.constant 0 : index
    %81 = vector.load %arg5[%c0_25, %c0_26] : memref<16x128xbf16, #tpu.memory_space<vmem>>, vector<16x128xbf16>
    %cst_27 = arith.constant dense<0.000000e+00> : vector<32x128xf32>
    %82 = tpu.matmul %80, %81, %cst_27 {dimension_numbers = #tpu.dot_dimension_numbers<[1], [0], [0], [1], [0, 0, 1, 1], [], []>} : vector<32x16xbf16>, vector<16x128xbf16>, vector<32x128xf32> -> vector<32x128xf32>
    %83 = tpu.reciprocal %79 {approx = true} : vector<32x1xf32> -> vector<32x1xf32>
    %84 = vector.broadcast %83 : vector<32x1xf32> to vector<32x128xf32>
    %85 = arith.mulf %82, %84 : vector<32x128xf32>
    %c0_28 = arith.constant 0 : index
    %c0_29 = arith.constant 0 : index
    %86 = vector.load %arg1[%c0_28, %c0_29] : memref<32x128xbf16, #tpu.memory_space<vmem>>, vector<32x128xbf16>
    %c0_30 = arith.constant 0 : index
    %c0_31 = arith.constant 0 : index
    %87 = vector.load %arg6[%c0_30, %c0_31] : memref<128x128xbf16, #tpu.memory_space<vmem>>, vector<128x128xbf16>
    %cst_32 = arith.constant dense<0.000000e+00> : vector<32x128xf32>
    %88 = tpu.matmul %86, %87, %cst_32 {dimension_numbers = #tpu.dot_dimension_numbers<[1], [0], [0], [1], [0, 0, 1, 1], [], []>} : vector<32x128xbf16>, vector<128x128xbf16>, vector<32x128xf32> -> vector<32x128xf32>
    %c0_33 = arith.constant 0 : index
    %c0_34 = arith.constant 0 : index
    %89 = vector.load %arg7[%c0_33, %c0_34] : memref<1x128xf32, #tpu.memory_space<vmem>>, vector<1x128xf32>
    %90 = vector.broadcast %89 : vector<1x128xf32> to vector<32x128xf32>
    %91 = arith.addf %88, %90 : vector<32x128xf32>
    %cst_35 = arith.constant 0.000000e+00 : f32
    %92 = vector.broadcast %cst_35 : f32 to vector<32x128xf32>
    %93 = arith.maximumf %91, %92 : vector<32x128xf32>
    %94 = arith.addf %93, %85 : vector<32x128xf32>
    %c0_36 = arith.constant 0 : index
    %c0_37 = arith.constant 0 : index
    %95 = vector.load %arg8[%c0_36, %c0_37] : memref<32x128xf32, #tpu.memory_space<vmem>>, vector<32x128xf32>
    tpu.vector_store %arg8[%c0_36, %c0_37], %94 {strides = array<i32>} : memref<32x128xf32, #tpu.memory_space<vmem>>, vector<32x128xf32>,
    return
  }
  func.func @transform_0(%arg0: i32) -> (i32, i32) {
    %c0_i32 = arith.constant 0 : i32
    %c0_i32_0 = arith.constant 0 : i32
    return %arg0, %c0_i32 : i32, i32
  }
  func.func @transform_1(%arg0: i32) -> (i32, i32) {
    %c0_i32 = arith.constant 0 : i32
    %c0_i32_0 = arith.constant 0 : i32
    return %arg0, %c0_i32 : i32, i32
  }
  func.func @transform_2(%arg0: i32) -> (i32, i32) {
    %c0_i32 = arith.constant 0 : i32
    %c0_i32_0 = arith.constant 0 : i32
    %c0_i32_1 = arith.constant 0 : i32
    return %c0_i32, %c0_i32_0 : i32, i32
  }
  func.func @transform_3(%arg0: i32) -> (i32, i32) {
    %c0_i32 = arith.constant 0 : i32
    %c0_i32_0 = arith.constant 0 : i32
    %c0_i32_1 = arith.constant 0 : i32
    return %c0_i32, %c0_i32_0 : i32, i32
  }
  func.func @transform_4(%arg0: i32) -> (i32, i32) {
    %c0_i32 = arith.constant 0 : i32
    %c0_i32_0 = arith.constant 0 : i32
    %c0_i32_1 = arith.constant 0 : i32
    return %c0_i32, %c0_i32_0 : i32, i32
  }
  func.func @transform_5(%arg0: i32) -> (i32, i32) {
    %c0_i32 = arith.constant 0 : i32
    %c0_i32_0 = arith.constant 0 : i32
    %c0_i32_1 = arith.constant 0 : i32
    return %c0_i32, %c0_i32_0 : i32, i32
  }
  func.func @transform_6(%arg0: i32) -> (i32, i32) {
    %c0_i32 = arith.constant 0 : i32
    %c0_i32_0 = arith.constant 0 : i32
    %c0_i32_1 = arith.constant 0 : i32
    return %c0_i32, %c0_i32_0 : i32, i32
  }
  func.func @transform_7(%arg0: i32) -> (i32, i32) {
    %c0_i32 = arith.constant 0 : i32
    %c0_i32_0 = arith.constant 0 : i32
    return %arg0, %c0_i32 : i32, i32
  }
}

</mosaic_0001>

<llo_original>
// kernel: transition_up.1
$region0: #{transition_up.1}
  #allocation0 [shape = 'u32[]', space=smem, size = 0x4, offset = 0x4, fixed_abs, tag = 'smem constant byte address 0x4 - core index']
  #allocation1 [shape = 'u32[72,128]{1,0:T(1,128)}', space=vmem, size = 0x9000, scoped, tag = 'internal scratch']
  %s0 = inlined_call_operand.vmem [shape: bf16[64,128], index: 0, kind: input, shape index: {}]
  %s1 = inlined_call_operand.vmem [shape: f32[64,8], index: 1, kind: input, shape index: {}]
  %s2 = inlined_call_operand.vmem [shape: f32[8,16], index: 2, kind: input, shape index: {}]
  %s3 = inlined_call_operand.vmem [shape: f32[1,16], index: 3, kind: input, shape index: {}]
  %s4 = inlined_call_operand.vmem [shape: bf16[16,128], index: 4, kind: input, shape index: {}]
  %s5 = inlined_call_operand.vmem [shape: bf16[128,128], index: 5, kind: input, shape index: {}]
  %s6 = inlined_call_operand.vmem [shape: f32[1,128], index: 6, kind: input, shape index: {}]
  %s7 = inlined_call_operand.vmem [shape: f32[64,128], index: 7, kind: output, shape index: {}]
  %s8 = sld [smem:[#allocation0]]
  $region61: #{transition_up.1} parent=0
    _
  %s10 = ssub.s32 1, %s8
  %s11 = scalar_select 0, %s10, %s8
  loop: start=0, step=1, limit=4
  $region2: #{transition_up.1} parent=0 // loop_pre_header
    _
  $region3: #{transition_up.1} parent=0 // loop_header
    %s13 = sphi 0, %s17
    %p14 = scmp.ge.s32.totalorder %s13, 4
    %s23 = sphi 0, %s25
    %s26 = sphi 0, %s23
    %s27 = sphi 0, %s26
    %s43 = sphi 0, %s27
    %s49 = sphi 0, %s51
    %s52 = sphi 0, %s49
    %s53 = sphi 0, %s52
    %s69 = sphi 0, %s53
    %s73 = sphi 0, %s73
    %s75 = sphi 0, %s73
    %s76 = sphi 0, %s75
    %s90 = sphi 0, %s76
    %s94 = sphi 0, %s94
    %s96 = sphi 0, %s94
    %s97 = sphi 0, %s96
    %s111 = sphi 0, %s97
    %s115 = sphi 0, %s115
    %s117 = sphi 0, %s115
    %s118 = sphi 0, %s117
    %s132 = sphi 0, %s118
    %s136 = sphi 0, %s136
    %s138 = sphi 0, %s136
    %s139 = sphi 0, %s138
    %s153 = sphi 0, %s139
    %s157 = sphi 0, %s157
    %s159 = sphi 0, %s157
    %s160 = sphi 0, %s159
    %s174 = sphi 0, %s160
    %s180 = sphi 0, %s182
    %s183 = sphi 0, %s180
    %s184 = sphi 0, %s183
    %s200 = sphi 0, %s184
  $region4: #{transition_up.1} parent=0 // loop_header_branch
    %16 = sbr.rel (%p14) target = $region8
  $region5: #{transition_up.1} parent=0 // loop_body
    %s18 = ssub.s32 %s13, 1
    %s19 = ssub.s32 %s13, 2
    %s20 = sadd.s32 %s13, 1
    %s21 = ssub.s32 %s13, %s20
    %p22 = scmp.eq.s32.totalorder %s21, 0
    %s24 = sadd.s32 %s23, 1
    %s25 = scalar_select %p22, %s23, %s24
    %p28 = pneg %p22
    %p29 = scmp.eq.s32.totalorder %s13, 1
    %p30 = por %p28, %p29
    %p31 = scmp.ne.s32.totalorder %s23, %s26
    %p32 = scmp.eq.s32.totalorder %s13, 0
    %p33 = por %p31, %p32
    %p34 = scmp.ne.s32.totalorder %s23, %s26
    %p35 = scmp.eq.s32.totalorder %s18, 1
    %p36 = por %p34, %p35
    %p37 = scmp.ne.s32.totalorder %s26, %s27
    %p38 = scmp.eq.s32.totalorder %s18, 0
    %p39 = por %p37, %p38
    %p40 = scmp.ne.s32.totalorder %s26, %s27
    %p41 = scmp.eq.s32.totalorder %s19, 1
    %p42 = por %p40, %p41
    %p44 = scmp.ne.s32.totalorder %s27, %s43
    %p45 = scmp.eq.s32.totalorder %s19, 0
    %p46 = por %p44, %p45
    %s47 = ssub.s32 %s13, %s20
    %p48 = scmp.eq.s32.totalorder %s47, 0
    %s50 = sadd.s32 %s49, 1
    %s51 = scalar_select %p48, %s49, %s50
    %p54 = pneg %p48
    %p55 = scmp.eq.s32.totalorder %s13, 1
    %p56 = por %p54, %p55
    %p57 = scmp.ne.s32.totalorder %s49, %s52
    %p58 = scmp.eq.s32.totalorder %s13, 0
    %p59 = por %p57, %p58
    %p60 = scmp.ne.s32.totalorder %s49, %s52
    %p61 = scmp.eq.s32.totalorder %s18, 1
    %p62 = por %p60, %p61
    %p63 = scmp.ne.s32.totalorder %s52, %s53
    %p64 = scmp.eq.s32.totalorder %s18, 0
    %p65 = por %p63, %p64
    %p66 = scmp.ne.s32.totalorder %s52, %s53
    %p67 = scmp.eq.s32.totalorder %s19, 1
    %p68 = por %p66, %p67
    %p70 = scmp.ne.s32.totalorder %s53, %s69
    %p71 = scmp.eq.s32.totalorder %s19, 0
    %p72 = por %p70, %p71
    %s74 = sadd.s32 %s73, 1
    %p77 = scmp.eq.s32.totalorder %s13, 1
    %p78 = scmp.ne.s32.totalorder %s73, %s75
    %p79 = scmp.eq.s32.totalorder %s13, 0
    %p80 = por %p78, %p79
    %p81 = scmp.ne.s32.totalorder %s73, %s75
    %p82 = scmp.eq.s32.totalorder %s18, 1
    %p83 = por %p81, %p82
    %p84 = scmp.ne.s32.totalorder %s75, %s76
    %p85 = scmp.eq.s32.totalorder %s18, 0
    %p86 = por %p84, %p85
    %p87 = scmp.ne.s32.totalorder %s75, %s76
    %p88 = scmp.eq.s32.totalorder %s19, 1
    %p89 = por %p87, %p88
    %p91 = scmp.ne.s32.totalorder %s76, %s90
    %p92 = scmp.eq.s32.totalorder %s19, 0
    %p93 = por %p91, %p92
    %s95 = sadd.s32 %s94, 1
    %p98 = scmp.eq.s32.totalorder %s13, 1
    %p99 = scmp.ne.s32.totalorder %s94, %s96
    %p100 = scmp.eq.s32.totalorder %s13, 0
    %p101 = por %p99, %p100
    %p102 = scmp.ne.s32.totalorder %s94, %s96
    %p103 = scmp.eq.s32.totalorder %s18, 1
    %p104 = por %p102, %p103
    %p105 = scmp.ne.s32.totalorder %s96, %s97
    %p106 = scmp.eq.s32.totalorder %s18, 0
    %p107 = por %p105, %p106
    %p108 = scmp.ne.s32.totalorder %s96, %s97
    %p109 = scmp.eq.s32.totalorder %s19, 1
    %p110 = por %p108, %p109
    %p112 = scmp.ne.s32.totalorder %s97, %s111
    %p113 = scmp.eq.s32.totalorder %s19, 0
    %p114 = por %p112, %p113
    %s116 = sadd.s32 %s115, 1
    %p119 = scmp.eq.s32.totalorder %s13, 1
    %p120 = scmp.ne.s32.totalorder %s115, %s117
    %p121 = scmp.eq.s32.totalorder %s13, 0
    %p122 = por %p120, %p121
    %p123 = scmp.ne.s32.totalorder %s115, %s117
    %p124 = scmp.eq.s32.totalorder %s18, 1
    %p125 = por %p123, %p124
    %p126 = scmp.ne.s32.totalorder %s117, %s118
    %p127 = scmp.eq.s32.totalorder %s18, 0
    %p128 = por %p126, %p127
    %p129 = scmp.ne.s32.totalorder %s117, %s118
    %p130 = scmp.eq.s32.totalorder %s19, 1
    %p131 = por %p129, %p130
    %p133 = scmp.ne.s32.totalorder %s118, %s132
    %p134 = scmp.eq.s32.totalorder %s19, 0
    %p135 = por %p133, %p134
    %s137 = sadd.s32 %s136, 1
    %p140 = scmp.eq.s32.totalorder %s13, 1
    %p141 = scmp.ne.s32.totalorder %s136, %s138
    %p142 = scmp.eq.s32.totalorder %s13, 0
    %p143 = por %p141, %p142
    %p144 = scmp.ne.s32.totalorder %s136, %s138
    %p145 = scmp.eq.s32.totalorder %s18, 1
    %p146 = por %p144, %p145
    %p147 = scmp.ne.s32.totalorder %s138, %s139
    %p148 = scmp.eq.s32.totalorder %s18, 0
    %p149 = por %p147, %p148
    %p150 = scmp.ne.s32.totalorder %s138, %s139
    %p151 = scmp.eq.s32.totalorder %s19, 1
    %p152 = por %p150, %p151
    %p154 = scmp.ne.s32.totalorder %s139, %s153
    %p155 = scmp.eq.s32.totalorder %s19, 0
    %p156 = por %p154, %p155
    %s158 = sadd.s32 %s157, 1
    %p161 = scmp.eq.s32.totalorder %s13, 1
    %p162 = scmp.ne.s32.totalorder %s157, %s159
    %p163 = scmp.eq.s32.totalorder %s13, 0
    %p164 = por %p162, %p163
    %p165 = scmp.ne.s32.totalorder %s157, %s159
    %p166 = scmp.eq.s32.totalorder %s18, 1
    %p167 = por %p165, %p166
    %p168 = scmp.ne.s32.totalorder %s159, %s160
    %p169 = scmp.eq.s32.totalorder %s18, 0
    %p170 = por %p168, %p169
    %p171 = scmp.ne.s32.totalorder %s159, %s160
    %p172 = scmp.eq.s32.totalorder %s19, 1
    %p173 = por %p171, %p172
    %p175 = scmp.ne.s32.totalorder %s160, %s174
    %p176 = scmp.eq.s32.totalorder %s19, 0
    %p177 = por %p175, %p176
    %s178 = ssub.s32 %s13, %s20
    %p179 = scmp.eq.s32.totalorder %s178, 0
    %s181 = sadd.s32 %s180, 1
    %s182 = scalar_select %p179, %s180, %s181
    %p185 = pneg %p179
    %p186 = scmp.eq.s32.totalorder %s13, 1
    %p187 = por %p185, %p186
    %p188 = scmp.ne.s32.totalorder %s180, %s183
    %p189 = scmp.eq.s32.totalorder %s13, 0
    %p190 = por %p188, %p189
    %p191 = scmp.ne.s32.totalorder %s180, %s183
    %p192 = scmp.eq.s32.totalorder %s18, 1
    %p193 = por %p191, %p192
    %p194 = scmp.ne.s32.totalorder %s183, %s184
    %p195 = scmp.eq.s32.totalorder %s18, 0
    %p196 = por %p194, %p195
    %p197 = scmp.ne.s32.totalorder %s183, %s184
    %p198 = scmp.eq.s32.totalorder %s19, 1
    %p199 = por %p197, %p198
    %p201 = scmp.ne.s32.totalorder %s184, %s200
    %p202 = scmp.eq.s32.totalorder %s19, 0
    %p203 = por %p201, %p202
    %p204 = scmp.le.s32.totalorder 1, %s13
    %p205 = scmp.lt.s32.totalorder %s13, 3
    %p206 = pnand %p204, %p205
    %p207 = pneg %p206
    // Predicated region
    $region9: #{transition_up.1} parent=5 // pred_check
      _
    $region10: #{transition_up.1} parent=5 // pred_check_branch
      %209 = sbr.rel (%p206) target = $region12
    $region11: #{transition_up.1} parent=5 // pred_region
      %s210 = ssub.s32 %s13, 1
      // Predicated region
      $region13: #{transition_up.1} parent=11 // pred_check
        %p211 = pneg %p86
      $region14: #{transition_up.1} parent=11 // pred_check_branch
        %213 = sbr.rel (%p211) target = $region16
      $region15: #{transition_up.1} parent=11 // pred_region
        _
      $region16: #{transition_up.1} parent=11 // pred_fallthru
        _
      // Predicated region
      $region17: #{transition_up.1} parent=11 // pred_check
        %p214 = pneg %p107
      $region18: #{transition_up.1} parent=11 // pred_check_branch
        %216 = sbr.rel (%p214) target = $region20
      $region19: #{transition_up.1} parent=11 // pred_region
        _
      $region20: #{transition_up.1} parent=11 // pred_fallthru
        _
      // Predicated region
      $region21: #{transition_up.1} parent=11 // pred_check
        %p217 = pneg %p128
      $region22: #{transition_up.1} parent=11 // pred_check_branch
        %219 = sbr.rel (%p217) target = $region24
      $region23: #{transition_up.1} parent=11 // pred_region
        _
      $region24: #{transition_up.1} parent=11 // pred_fallthru
        _
      // Predicated region
      $region25: #{transition_up.1} parent=11 // pred_check
        %p220 = pneg %p149
      $region26: #{transition_up.1} parent=11 // pred_check_branch
        %222 = sbr.rel (%p220) target = $region28
      $region27: #{transition_up.1} parent=11 // pred_region
        _
      $region28: #{transition_up.1} parent=11 // pred_fallthru
        _
      // Predicated region
      $region29: #{transition_up.1} parent=11 // pred_check
        %p223 = pneg %p170
      $region30: #{transition_up.1} parent=11 // pred_check_branch
        %225 = sbr.rel (%p223) target = $region32
      $region31: #{transition_up.1} parent=11 // pred_region
        _
      $region32: #{transition_up.1} parent=11 // pred_fallthru
        _
    $region12: #{transition_up.1} parent=5 // pred_fallthru
      _
    %p226 = scmp.lt.s32.totalorder %s13, 2
    // Predicated region
    $region33: #{transition_up.1} parent=5 // pred_check
      %p227 = pneg %p226
    $region34: #{transition_up.1} parent=5 // pred_check_branch
      %229 = sbr.rel (%p227) target = $region36
    $region35: #{transition_up.1} parent=5 // pred_region
      // Predicated region
      $region37: #{transition_up.1} parent=35 // pred_check
        %p230 = pneg %p33
      $region38: #{transition_up.1} parent=35 // pred_check_branch
        %232 = sbr.rel (%p230) target = $region40
      $region39: #{transition_up.1} parent=35 // pred_region
        %s233 = smul.u32 4, %s13
        %p234 = scmp.lt.s32.totalorder %s233, 7
        %s235 = scalar_select %p234, %s233, 7
        %s236 = smul.addr %s235, 4
        %s237 = scalar_lea.vmem %s0, %s236
        %s238 = smul.u32 4, %s13
      $region40: #{transition_up.1} parent=35 // pred_fallthru
        _
      // Predicated region
      $region41: #{transition_up.1} parent=35 // pred_check
        %p239 = pneg %p59
      $region42: #{transition_up.1} parent=35 // pred_check_branch
        %241 = sbr.rel (%p239) target = $region44
      $region43: #{transition_up.1} parent=35 // pred_region
        %s242 = smul.u32 4, %s13
        %p243 = scmp.lt.s32.totalorder %s242, 7
        %s244 = scalar_select %p243, %s242, 7
        %s245 = smul.addr %s244, 8
        %s246 = scalar_lea.vmem %s1, %s245
        %s247 = smul.u32 4, %s13
      $region44: #{transition_up.1} parent=35 // pred_fallthru
        _
    $region36: #{transition_up.1} parent=5 // pred_fallthru
      _
    %p248 = scmp.le.s32.totalorder 1, %s13
    %p249 = scmp.lt.s32.totalorder %s13, 3
    %p250 = pnand %p248, %p249
    %p251 = pneg %p250
    // Predicated region
    $region45: #{transition_up.1} parent=5 // pred_check
      _
    $region46: #{transition_up.1} parent=5 // pred_check_branch
      %253 = sbr.rel (%p250) target = $region48
    $region47: #{transition_up.1} parent=5 // pred_region
      %s254 = ssub.s32 %s13, 1
      %s255 = smul.u32 4, %s18
      %p256 = scmp.lt.s32.totalorder %s255, 7
      %s257 = scalar_select %p256, %s255, 7
      %s258 = smul.addr %s257, 4
      %s259 = scalar_lea.vmem %s0, %s258
      %p260 = pneg %p39
      %p261 = pneg %p36
      %s262 = smul.u32 4, %s18
      %p263 = scmp.lt.s32.totalorder %s262, 7
      %s264 = scalar_select %p263, %s262, 7
      %s265 = smul.addr %s264, 8
      %s266 = scalar_lea.vmem %s1, %s265
      %p267 = pneg %p65
      %p268 = pneg %p62
      %p269 = pneg %p86
      %p270 = pneg %p83
      %p271 = pneg %p107
      %p272 = pneg %p104
      %p273 = pneg %p128
      %p274 = pneg %p125
      %p275 = pneg %p149
      %p276 = pneg %p146
      %p277 = pneg %p170
      %p278 = pneg %p167
      %p279 = pneg %p196
      %p280 = pneg %p193
      %s281 = smul.u32 4, %s18
      %p282 = scmp.lt.s32.totalorder %s281, 7
      %s283 = scalar_select %p282, %s281, 7
      %s284 = smul.addr %s283, 8
      %s285 = scalar_lea.vmem %s7, %s284
      %s286 = smul.u32 4, %s18
      %p287 = scmp.lt.s32.totalorder %s286, 7
      %s288 = scalar_select %p287, %s286, 7
      %s289 = smul.addr %s288, 4
      %s290 = scalar_lea.vmem %s0, %s289
      %s291 = smul.u32 4, %s18
      %s292 = smul.u32 4, %s18
      %p293 = scmp.lt.s32.totalorder %s292, 7
      %s294 = scalar_select %p293, %s292, 7
      %s295 = smul.addr %s294, 8
      %s296 = scalar_lea.vmem %s1, %s295
      %s297 = smul.u32 4, %s18
      %s298 = smul.u32 4, %s18
      %p299 = scmp.lt.s32.totalorder %s298, 7
      %s300 = scalar_select %p299, %s298, 7
      %s301 = smul.addr %s300, 8
      %s302 = scalar_lea.vmem %s7, %s301
      %s303 = smul.u32 4, %s18
      %v305 = vld [vmem:[%s296] sm:$0xff]
      %v306 = vld [vmem:[%s296 + $0x8] sm:$0xff]
      %v307 = vld [vmem:[%s296 + $0x10] sm:$0xff]
      %v308 = vld [vmem:[%s296 + $0x18] sm:$0xff]
      %v309 = vmul.f32 %v305, %v305
      %v310 = vmul.f32 %v306, %v306
      %v311 = vmul.f32 %v307, %v307
      %v312 = vmul.f32 %v308, %v308
      %vm313 = vcmask 64512
      %v314 = vsel %vm313, %v309, 0.0
      %315 = vadd.xlane.f32.xlu0 %v314
      %v316 = vpop.xlane.xlu0 %315
      %v317 = vsel %vm313, %v310, 0.0
      %318 = vadd.xlane.f32.xlu0 %v317
      %v319 = vpop.xlane.xlu0 %318
      %v320 = vsel %vm313, %v311, 0.0
      %321 = vadd.xlane.f32.xlu0 %v320
      %v322 = vpop.xlane.xlu0 %321
      %v323 = vsel %vm313, %v312, 0.0
      %324 = vadd.xlane.f32.xlu0 %v323
      %v325 = vpop.xlane.xlu0 %324
      %v326 = vld [vmem:[%s2] sm:$0xff]
      %v328 = vsel %vm313, %v305, 0
      %v331 = vsel %vm313, %v306, 0
      %v334 = vsel %vm313, %v307, 0
      %v337 = vsel %vm313, %v308, 0
      %339 = vmatpush.msra.mxu0 0.0
      %340 = vmatpush.msra.mxu0 0.0
      %341 = vmatpush.msra.mxu0 0.0
      %342 = vmatpush.msra.mxu0 0.0
      %343 = vmatpush.msra.mxu0 0.0
      %344 = vmatpush.msra.mxu0 0.0
      %345 = vmatpush.msra.mxu0 0.0
      %346 = vmatpush.msra.mxu0 0.0
      %347 = vmatpush.msra.mxu0 0.0
      %348 = vmatpush.msra.mxu0 0.0
      %349 = vmatpush.msra.mxu0 0.0
      %350 = vmatpush.msra.mxu0 0.0
      %351 = vmatpush.msra.mxu0 0.0
      %352 = vmatpush.msra.mxu0 0.0
      %353 = vmatpush.msra.mxu0 0.0
      %354 = vmatpush.msra.mxu0 %v326
      %355 = vmatmul.f32.gmra.mxu0 %v328
      %v356 = vpop.f32.mrf.mxu0
      %v357 = vadd.f32 0.0, %v356
      %358 = vmatmul.f32.gmra.mxu0 %v331
      %v359 = vpop.f32.mrf.mxu0
      %v360 = vadd.f32 0.0, %v359
      %361 = vmatmul.f32.gmra.mxu0 %v334
      %v362 = vpop.f32.mrf.mxu0
      %v363 = vadd.f32 0.0, %v362
      %364 = vmatmul.f32.gmra.mxu0 %v337
      %v365 = vpop.f32.mrf.mxu0
      %v366 = vadd.f32 0.0, %v365
      %367 = vdwg.mxu0
      %v368 = vld [vmem:[%s3] sm:$0x1]
      %v370 = vperm.slane %v368, 0
      %v372 = vadd.f32 %v316, %v370
      %v373 = vadd.f32 %v319, %v370
      %v374 = vadd.f32 %v322, %v370
      %v375 = vadd.f32 %v325, %v370
      %v376 = vmul.f32 %v357, 2.0
      %v377 = vmul.f32 %v360, 2.0
      %v378 = vmul.f32 %v363, 2.0
      %v379 = vmul.f32 %v366, 2.0
      %v380 = vsub.f32 %v372, %v376
      %v381 = vsub.f32 %v373, %v377
      %v382 = vsub.f32 %v374, %v378
      %v383 = vsub.f32 %v375, %v379
      %v384 = vmax.f32 %v380, 0.0
      %v385 = vmax.f32 %v381, 0.0
      %v386 = vmax.f32 %v382, 0.0
      %v387 = vmax.f32 %v383, 0.0
      %v388 = vlaneseq
      %v389 = vand.u32 %v388, 127
      %v394 = vand.u32 %v384, 4294967280
      %v395 = vand.u32 %v385, 4294967280
      %v396 = vand.u32 %v386, 4294967280
      %v397 = vand.u32 %v387, 4294967280
      %v398 = vor.u32 %v394, %v389
      %v399 = vor.u32 %v395, %v389
      %v400 = vor.u32 %v396, %v389
      %v401 = vor.u32 %v397, %v389
      %vm402 = vcmask 130048
      %v403 = vsel %vm402, %v398, 2147483647
      %v404 = vand.u32 %v403, 65535
      %v405 = vshra.s32 %v403, 16
      %v406 = vcvt.s32.f32 %v404
      %v407 = vcvt.s32.f32 %v405
      %408 = vmin.xlane.f32.xlu0 %v407
      %v409 = vpop.xlane.xlu0 %408
      %vm410 = vcmp.eq.f32.partialorder %v407, %v409
      %v411 = vsel %vm410, %v406, inf
      %412 = vmin.xlane.f32.xlu0 %v411
      %v413 = vpop.xlane.xlu0 %412
      %v414 = vcvt.f32.s32 %v413
      %v415 = vcvt.f32.s32 %v409
      %v416 = vshll.u32 %v415, 16
      %v417 = vadd.s32 %v416, %v414
      %v418 = vsel %vm402, %v399, 2147483647
      %v419 = vand.u32 %v418, 65535
      %v420 = vshra.s32 %v418, 16
      %v421 = vcvt.s32.f32 %v419
      %v422 = vcvt.s32.f32 %v420
      %423 = vmin.xlane.f32.xlu0 %v422
      %v424 = vpop.xlane.xlu0 %423
      %vm425 = vcmp.eq.f32.partialorder %v422, %v424
      %v426 = vsel %vm425, %v421, inf
      %427 = vmin.xlane.f32.xlu0 %v426
      %v428 = vpop.xlane.xlu0 %427
      %v429 = vcvt.f32.s32 %v428
      %v430 = vcvt.f32.s32 %v424
      %v431 = vshll.u32 %v430, 16
      %v432 = vadd.s32 %v431, %v429
      %v433 = vsel %vm402, %v400, 2147483647
      %v434 = vand.u32 %v433, 65535
      %v435 = vshra.s32 %v433, 16
      %v436 = vcvt.s32.f32 %v434
      %v437 = vcvt.s32.f32 %v435
      %438 = vmin.xlane.f32.xlu0 %v437
      %v439 = vpop.xlane.xlu0 %438
      %vm440 = vcmp.eq.f32.partialorder %v437, %v439
      %v441 = vsel %vm440, %v436, inf
      %442 = vmin.xlane.f32.xlu0 %v441
      %v443 = vpop.xlane.xlu0 %442
      %v444 = vcvt.f32.s32 %v443
      %v445 = vcvt.f32.s32 %v439
      %v446 = vshll.u32 %v445, 16
      %v447 = vadd.s32 %v446, %v444
      %v448 = vsel %vm402, %v401, 2147483647
      %v449 = vand.u32 %v448, 65535
      %v450 = vshra.s32 %v448, 16
      %v451 = vcvt.s32.f32 %v449
      %v452 = vcvt.s32.f32 %v450
      %453 = vmin.xlane.f32.xlu0 %v452
      %v454 = vpop.xlane.xlu0 %453
      %vm455 = vcmp.eq.f32.partialorder %v452, %v454
      %v456 = vsel %vm455, %v451, inf
      %457 = vmin.xlane.f32.xlu0 %v456
      %v458 = vpop.xlane.xlu0 %457
      %v459 = vcvt.f32.s32 %v458
      %v460 = vcvt.f32.s32 %v454
      %v461 = vshll.u32 %v460, 16
      %v462 = vadd.s32 %v461, %v459
      %v463 = vand.u32 %v417, 15
      %v464 = vand.u32 %v432, 15
      %v465 = vand.u32 %v447, 15
      %v466 = vand.u32 %v462, 15
      %v467 = vand.u32 %v417, 4294967280
      %v468 = vand.u32 %v432, 4294967280
      %v469 = vand.u32 %v447, 4294967280
      %v470 = vand.u32 %v462, 4294967280
      %v475 = vmax.f32 %v467, 1e-16
      %v476 = vmax.f32 %v468, 1e-16
      %v477 = vmax.f32 %v469, 1e-16
      %v478 = vmax.f32 %v470, 1e-16
      %v479 = vrcp.pop %v475
      %v480 = vrcp.pop %v476
      %v481 = vrcp.pop %v477
      %v482 = vrcp.pop %v478
      %vm483 = vcmp.eq.s32.totalorder %v389, %v463
      %vm484 = vcmp.eq.s32.totalorder %v389, %v464
      %vm485 = vcmp.eq.s32.totalorder %v389, %v465
      %vm486 = vcmp.eq.s32.totalorder %v389, %v466
      %v487 = vsel %vm483, %v479, 0.0
      %v488 = vsel %vm484, %v480, 0.0
      %v489 = vsel %vm485, %v481, 0.0
      %v490 = vsel %vm486, %v482, 0.0
      %v491 = vadd.f32 %v487, 0.0
      %v492 = vadd.f32 %v488, 0.0
      %v493 = vadd.f32 %v489, 0.0
      %v494 = vadd.f32 %v490, 0.0
      %v495 = vadd.f32 %v479, 0.0
      %v496 = vadd.f32 %v480, 0.0
      %v497 = vadd.f32 %v481, 0.0
      %v498 = vadd.f32 %v482, 0.0
      %v499 = vsel %vm483, 2147483647, %v398
      %v500 = vsel %vm484, 2147483647, %v399
      %v501 = vsel %vm485, 2147483647, %v400
      %v502 = vsel %vm486, 2147483647, %v401
      %v503 = vsel %vm402, %v499, 2147483647
      %v504 = vand.u32 %v503, 65535
      %v505 = vshra.s32 %v503, 16
      %v506 = vcvt.s32.f32 %v504
      %v507 = vcvt.s32.f32 %v505
      %508 = vmin.xlane.f32.xlu0 %v507
      %v509 = vpop.xlane.xlu0 %508
      %vm510 = vcmp.eq.f32.partialorder %v507, %v509
      %v511 = vsel %vm510, %v506, inf
      %512 = vmin.xlane.f32.xlu0 %v511
      %v513 = vpop.xlane.xlu0 %512
      %v514 = vcvt.f32.s32 %v513
      %v515 = vcvt.f32.s32 %v509
      %v516 = vshll.u32 %v515, 16
      %v517 = vadd.s32 %v516, %v514
      %v518 = vsel %vm402, %v500, 2147483647
      %v519 = vand.u32 %v518, 65535
      %v520 = vshra.s32 %v518, 16
      %v521 = vcvt.s32.f32 %v519
      %v522 = vcvt.s32.f32 %v520
      %523 = vmin.xlane.f32.xlu0 %v522
      %v524 = vpop.xlane.xlu0 %523
      %vm525 = vcmp.eq.f32.partialorder %v522, %v524
      %v526 = vsel %vm525, %v521, inf
      %527 = vmin.xlane.f32.xlu0 %v526
      %v528 = vpop.xlane.xlu0 %527
      %v529 = vcvt.f32.s32 %v528
      %v530 = vcvt.f32.s32 %v524
      %v531 = vshll.u32 %v530, 16
      %v532 = vadd.s32 %v531, %v529
      %v533 = vsel %vm402, %v501, 2147483647
      %v534 = vand.u32 %v533, 65535
      %v535 = vshra.s32 %v533, 16
      %v536 = vcvt.s32.f32 %v534
      %v537 = vcvt.s32.f32 %v535
      %538 = vmin.xlane.f32.xlu0 %v537
      %v539 = vpop.xlane.xlu0 %538
      %vm540 = vcmp.eq.f32.partialorder %v537, %v539
      %v541 = vsel %vm540, %v536, inf
      %542 = vmin.xlane.f32.xlu0 %v541
      %v543 = vpop.xlane.xlu0 %542
      %v544 = vcvt.f32.s32 %v543
      %v545 = vcvt.f32.s32 %v539
      %v546 = vshll.u32 %v545, 16
      %v547 = vadd.s32 %v546, %v544
      %v548 = vsel %vm402, %v502, 2147483647
      %v549 = vand.u32 %v548, 65535
      %v550 = vshra.s32 %v548, 16
      %v551 = vcvt.s32.f32 %v549
      %v552 = vcvt.s32.f32 %v550
      %553 = vmin.xlane.f32.xlu0 %v552
      %v554 = vpop.xlane.xlu0 %553
      %vm555 = vcmp.eq.f32.partialorder %v552, %v554
      %v556 = vsel %vm555, %v551, inf
      %557 = vmin.xlane.f32.xlu0 %v556
      %v558 = vpop.xlane.xlu0 %557
      %v559 = vcvt.f32.s32 %v558
      %v560 = vcvt.f32.s32 %v554
      %v561 = vshll.u32 %v560, 16
      %v562 = vadd.s32 %v561, %v559
      %v563 = vand.u32 %v517, 15
      %v564 = vand.u32 %v532, 15
      %v565 = vand.u32 %v547, 15
      %v566 = vand.u32 %v562, 15
      %v567 = vand.u32 %v517, 4294967280
      %v568 = vand.u32 %v532, 4294967280
      %v569 = vand.u32 %v547, 4294967280
      %v570 = vand.u32 %v562, 4294967280
      %v575 = vmax.f32 %v567, 1e-16
      %v576 = vmax.f32 %v568, 1e-16
      %v577 = vmax.f32 %v569, 1e-16
      %v578 = vmax.f32 %v570, 1e-16
      %v579 = vrcp.pop %v575
      %v580 = vrcp.pop %v576
      %v581 = vrcp.pop %v577
      %v582 = vrcp.pop %v578
      %vm583 = vcmp.eq.s32.totalorder %v389, %v563
      %vm584 = vcmp.eq.s32.totalorder %v389, %v564
      %vm585 = vcmp.eq.s32.totalorder %v389, %v565
      %vm586 = vcmp.eq.s32.totalorder %v389, %v566
      %v587 = vsel %vm583, %v579, 0.0
      %v588 = vsel %vm584, %v580, 0.0
      %v589 = vsel %vm585, %v581, 0.0
      %v590 = vsel %vm586, %v582, 0.0
      %v591 = vadd.f32 %v491, %v587
      %v592 = vadd.f32 %v492, %v588
      %v593 = vadd.f32 %v493, %v589
      %v594 = vadd.f32 %v494, %v590
      %v595 = vadd.f32 %v495, %v579
      %v596 = vadd.f32 %v496, %v580
      %v597 = vadd.f32 %v497, %v581
      %v598 = vadd.f32 %v498, %v582
      %v599 = vsel %vm583, 2147483647, %v499
      %v600 = vsel %vm584, 2147483647, %v500
      %v601 = vsel %vm585, 2147483647, %v501
      %v602 = vsel %vm586, 2147483647, %v502
      %v603 = vsel %vm402, %v599, 2147483647
      %v604 = vand.u32 %v603, 65535
      %v605 = vshra.s32 %v603, 16
      %v606 = vcvt.s32.f32 %v604
      %v607 = vcvt.s32.f32 %v605
      %608 = vmin.xlane.f32.xlu0 %v607
      %v609 = vpop.xlane.xlu0 %608
      %vm610 = vcmp.eq.f32.partialorder %v607, %v609
      %v611 = vsel %vm610, %v606, inf
      %612 = vmin.xlane.f32.xlu0 %v611
      %v613 = vpop.xlane.xlu0 %612
      %v614 = vcvt.f32.s32 %v613
      %v615 = vcvt.f32.s32 %v609
      %v616 = vshll.u32 %v615, 16
      %v617 = vadd.s32 %v616, %v614
      %v618 = vsel %vm402, %v600, 2147483647
      %v619 = vand.u32 %v618, 65535
      %v620 = vshra.s32 %v618, 16
      %v621 = vcvt.s32.f32 %v619
      %v622 = vcvt.s32.f32 %v620
      %623 = vmin.xlane.f32.xlu0 %v622
      %v624 = vpop.xlane.xlu0 %623
      %vm625 = vcmp.eq.f32.partialorder %v622, %v624
      %v626 = vsel %vm625, %v621, inf
      %627 = vmin.xlane.f32.xlu0 %v626
      %v628 = vpop.xlane.xlu0 %627
      %v629 = vcvt.f32.s32 %v628
      %v630 = vcvt.f32.s32 %v624
      %v631 = vshll.u32 %v630, 16
      %v632 = vadd.s32 %v631, %v629
      %v633 = vsel %vm402, %v601, 2147483647
      %v634 = vand.u32 %v633, 65535
      %v635 = vshra.s32 %v633, 16
      %v636 = vcvt.s32.f32 %v634
      %v637 = vcvt.s32.f32 %v635
      %638 = vmin.xlane.f32.xlu0 %v637
      %v639 = vpop.xlane.xlu0 %638
      %vm640 = vcmp.eq.f32.partialorder %v637, %v639
      %v641 = vsel %vm640, %v636, inf
      %642 = vmin.xlane.f32.xlu0 %v641
      %v643 = vpop.xlane.xlu0 %642
      %v644 = vcvt.f32.s32 %v643
      %v645 = vcvt.f32.s32 %v639
      %v646 = vshll.u32 %v645, 16
      %v647 = vadd.s32 %v646, %v644
      %v648 = vsel %vm402, %v602, 2147483647
      %v649 = vand.u32 %v648, 65535
      %v650 = vshra.s32 %v648, 16
      %v651 = vcvt.s32.f32 %v649
      %v652 = vcvt.s32.f32 %v650
      %653 = vmin.xlane.f32.xlu0 %v652
      %v654 = vpop.xlane.xlu0 %653
      %vm655 = vcmp.eq.f32.partialorder %v652, %v654
      %v656 = vsel %vm655, %v651, inf
      %657 = vmin.xlane.f32.xlu0 %v656
      %v658 = vpop.xlane.xlu0 %657
      %v659 = vcvt.f32.s32 %v658
      %v660 = vcvt.f32.s32 %v654
      %v661 = vshll.u32 %v660, 16
      %v662 = vadd.s32 %v661, %v659
      %v663 = vand.u32 %v617, 15
      %v664 = vand.u32 %v632, 15
      %v665 = vand.u32 %v647, 15
      %v666 = vand.u32 %v662, 15
      %v667 = vand.u32 %v617, 4294967280
      %v668 = vand.u32 %v632, 4294967280
      %v669 = vand.u32 %v647, 4294967280
      %v670 = vand.u32 %v662, 4294967280
      %v675 = vmax.f32 %v667, 1e-16
      %v676 = vmax.f32 %v668, 1e-16
      %v677 = vmax.f32 %v669, 1e-16
      %v678 = vmax.f32 %v670, 1e-16
      %v679 = vrcp.pop %v675
      %v680 = vrcp.pop %v676
      %v681 = vrcp.pop %v677
      %v682 = vrcp.pop %v678
      %vm683 = vcmp.eq.s32.totalorder %v389, %v663
      %vm684 = vcmp.eq.s32.totalorder %v389, %v664
      %vm685 = vcmp.eq.s32.totalorder %v389, %v665
      %vm686 = vcmp.eq.s32.totalorder %v389, %v666
      %v687 = vsel %vm683, %v679, 0.0
      %v688 = vsel %vm684, %v680, 0.0
      %v689 = vsel %vm685, %v681, 0.0
      %v690 = vsel %vm686, %v682, 0.0
      %v691 = vadd.f32 %v591, %v687
      %v692 = vadd.f32 %v592, %v688
      %v693 = vadd.f32 %v593, %v689
      %v694 = vadd.f32 %v594, %v690
      %v695 = vadd.f32 %v595, %v679
      %v696 = vadd.f32 %v596, %v680
      %v697 = vadd.f32 %v597, %v681
      %v698 = vadd.f32 %v598, %v682
      %v699 = vpack.c.bf16 %v692, %v691
      %v700 = vpack.c.bf16 %v694, %v693
      %v701 = vld [vmem:[%s4] sm:$0xf]
      %v702 = vld [vmem:[%s4 + $0x4] sm:$0xf]
      %v705 = vunpack.c.l.b16 %v701
      %v706 = vunpack.c.l.b16 %v702
      %v707 = vpack.c.b16 %v706, %v705
      %v710 = vsel %vm402, %v699, 0
      %v713 = vsel %vm402, %v700, 0
      %715 = vmatpush.bf16.msra.mxu0 0
      %716 = vmatpush.bf16.msra.mxu0 0
      %717 = vmatpush.bf16.msra.mxu0 0
      %718 = vmatpush.bf16.msra.mxu0 0
      %719 = vmatpush.bf16.msra.mxu0 0
      %720 = vmatpush.bf16.msra.mxu0 0
      %721 = vmatpush.bf16.msra.mxu0 0
      %722 = vmatpush.bf16.msra.mxu0 %v707
      %723 = vmatmul.bf16.gmra.mxu0 %v710
      %v724 = vpop.f32.mrf.mxu0
      %v725 = vadd.f32 0.0, %v724
      %v726 = vpop.f32.mrf.mxu0
      %v727 = vadd.f32 0.0, %v726
      %728 = vmatmul.bf16.gmra.mxu0 %v713
      %v729 = vpop.f32.mrf.mxu0
      %v730 = vadd.f32 0.0, %v729
      %v731 = vpop.f32.mrf.mxu0
      %v732 = vadd.f32 0.0, %v731
      %733 = vdwg.mxu0
      %v734 = vrcp.pop %v695
      %v735 = vrcp.pop %v696
      %v736 = vrcp.pop %v697
      %v737 = vrcp.pop %v698
      %v738 = vmul.f32 %v725, %v734
      %v739 = vmul.f32 %v727, %v735
      %v740 = vmul.f32 %v730, %v736
      %v741 = vmul.f32 %v732, %v737
      %v742 = vld [vmem:[%s290] sm:$0xf]
      %v743 = vld [vmem:[%s290 + $0x4] sm:$0xf]
      %v744 = vld [vmem:[%s290 + $0x8] sm:$0xf]
      %v745 = vld [vmem:[%s290 + $0xc] sm:$0xf]
      %v746 = vld [vmem:[%s5] sm:$0xf]
      %v747 = vld [vmem:[%s5 + $0x4] sm:$0xf]
      %v748 = vld [vmem:[%s5 + $0x8] sm:$0xf]
      %v749 = vld [vmem:[%s5 + $0xc] sm:$0xf]
      %v750 = vld [vmem:[%s5 + $0x10] sm:$0xf]
      %v751 = vld [vmem:[%s5 + $0x14] sm:$0xf]
      %v752 = vld [vmem:[%s5 + $0x18] sm:$0xf]
      %v753 = vld [vmem:[%s5 + $0x1c] sm:$0xf]
      %v754 = vld [vmem:[%s5 + $0x20] sm:$0xf]
      %v755 = vld [vmem:[%s5 + $0x24] sm:$0xf]
      %v756 = vld [vmem:[%s5 + $0x28] sm:$0xf]
      %v757 = vld [vmem:[%s5 + $0x2c] sm:$0xf]
      %v758 = vld [vmem:[%s5 + $0x30] sm:$0xf]
      %v759 = vld [vmem:[%s5 + $0x34] sm:$0xf]
      %v760 = vld [vmem:[%s5 + $0x38] sm:$0xf]
      %v761 = vld [vmem:[%s5 + $0x3c] sm:$0xf]
      %v762 = vld [vmem:[%s6] sm:$0x1]
      %v764 = vperm.slane %v762, 0
      %v770 = vunpack.c.l.b16 %v742
      %v771 = vunpack.c.l.b16 %v743
      %v772 = vunpack.c.l.b16 %v744
      %v773 = vunpack.c.l.b16 %v745
      %v774 = vpack.c.b16 %v771, %v770
      %v775 = vpack.c.b16 %v773, %v772
      %v794 = vunpack.c.l.b16 %v746
      %v795 = vunpack.c.l.b16 %v747
      %v796 = vunpack.c.l.b16 %v748
      %v797 = vunpack.c.l.b16 %v749
      %v798 = vunpack.c.l.b16 %v750
      %v799 = vunpack.c.l.b16 %v751
      %v800 = vunpack.c.l.b16 %v752
      %v801 = vunpack.c.l.b16 %v753
      %v802 = vunpack.c.l.b16 %v754
      %v803 = vunpack.c.l.b16 %v755
      %v804 = vunpack.c.l.b16 %v756
      %v805 = vunpack.c.l.b16 %v757
      %v806 = vunpack.c.l.b16 %v758
      %v807 = vunpack.c.l.b16 %v759
      %v808 = vunpack.c.l.b16 %v760
      %v809 = vunpack.c.l.b16 %v761
      %v810 = vpack.c.b16 %v795, %v794
      %v811 = vpack.c.b16 %v797, %v796
      %v812 = vpack.c.b16 %v799, %v798
      %v813 = vpack.c.b16 %v801, %v800
      %v814 = vpack.c.b16 %v803, %v802
      %v815 = vpack.c.b16 %v805, %v804
      %v816 = vpack.c.b16 %v807, %v806
      %v817 = vpack.c.b16 %v809, %v808
      %826 = vmatpush.bf16.msra.mxu0 %v817
      %827 = vmatpush.bf16.msra.mxu0 %v816
      %828 = vmatpush.bf16.msra.mxu0 %v815
      %829 = vmatpush.bf16.msra.mxu0 %v814
      %830 = vmatpush.bf16.msra.mxu0 %v813
      %831 = vmatpush.bf16.msra.mxu0 %v812
      %832 = vmatpush.bf16.msra.mxu0 %v811
      %833 = vmatpush.bf16.msra.mxu0 %v810
      %834 = vmatmul.bf16.gmra.mxu0 %v774
      %v835 = vpop.f32.mrf.mxu0
      %v836 = vadd.f32 %v764, %v835
      %v837 = vpop.f32.mrf.mxu0
      %v838 = vadd.f32 %v764, %v837
      %839 = vmatmul.bf16.gmra.mxu0 %v775
      %v840 = vpop.f32.mrf.mxu0
      %v841 = vadd.f32 %v764, %v840
      %v842 = vpop.f32.mrf.mxu0
      %v843 = vadd.f32 %v764, %v842
      %844 = vdwg.mxu0
      %v845 = vmax.f32 %v836, 0.0
      %v846 = vmax.f32 %v838, 0.0
      %v847 = vmax.f32 %v841, 0.0
      %v848 = vmax.f32 %v843, 0.0
      %v849 = vadd.f32 %v845, %v738
      %v850 = vadd.f32 %v846, %v739
      %v851 = vadd.f32 %v847, %v740
      %v852 = vadd.f32 %v848, %v741
      %853 = vst [vmem:[%s302] sm:$0xff] %v849
      %854 = vst [vmem:[%s302 + $0x8] sm:$0xff] %v850
      %855 = vst [vmem:[%s302 + $0x10] sm:$0xff] %v851
      %856 = vst [vmem:[%s302 + $0x18] sm:$0xff] %v852
      %s857 = smul.u32 4, %s18
      %p858 = scmp.lt.s32.totalorder %s857, 7
      %s859 = scalar_select %p858, %s857, 7
      %s860 = smul.addr %s859, 8
      %s861 = scalar_lea.vmem %s7, %s860
      // Predicated region
      $region49: #{transition_up.1} parent=47 // pred_check
        %p862 = pneg %p193
      $region50: #{transition_up.1} parent=47 // pred_check_branch
        %864 = sbr.rel (%p862) target = $region52
      $region51: #{transition_up.1} parent=47 // pred_region
        %s865 = smul.u32 4, %s18
      $region52: #{transition_up.1} parent=47 // pred_fallthru
        _
    $region48: #{transition_up.1} parent=5 // pred_fallthru
      _
    %p866 = scmp.le.s32.totalorder 2, %s13
    // Predicated region
    $region53: #{transition_up.1} parent=5 // pred_check
      %p867 = pneg %p866
    $region54: #{transition_up.1} parent=5 // pred_check_branch
      %869 = sbr.rel (%p867) target = $region56
    $region55: #{transition_up.1} parent=5 // pred_region
      %s870 = ssub.s32 %s13, 2
      // Predicated region
      $region57: #{transition_up.1} parent=55 // pred_check
        %p871 = pneg %p199
      $region58: #{transition_up.1} parent=55 // pred_check_branch
        %873 = sbr.rel (%p871) target = $region60
      $region59: #{transition_up.1} parent=55 // pred_region
        %s874 = smul.u32 4, %s19
        %p875 = scmp.lt.s32.totalorder %s874, 7
        %s876 = scalar_select %p875, %s874, 7
        %s877 = smul.addr %s876, 8
        %s878 = scalar_lea.vmem %s7, %s877
      $region60: #{transition_up.1} parent=55 // pred_fallthru
        _
    $region56: #{transition_up.1} parent=5 // pred_fallthru
      _
  $region6: #{transition_up.1} parent=0 // loop_footer
    %s17 = sadd.s32 1, %s13
  $region7: #{transition_up.1} parent=0 // loop_footer_branch
    %12 = sbr.rel target = $region3
  $region8: #{transition_up.1} parent=0 // loop_exit
    _

</llo_original>
